<compile_context>
chip_gen: v6e
topology: v6e:2x2x1
jax: 0.10.0
libtpu: 0.0.40
codegen_flags: <defaults>
</compile_context>

<pallas_src>
import numpy as np
import jax
import jax.numpy as jnp
from jax.experimental import pallas as pl
from jax.experimental.pallas import tpu as pltpu


def _pad128(n):
    return -(-n // 128) * 128


# --------------------------------------------------------------------------- #
# Parameter folding: causal dilated conv / 1x1 conv / per-timestep linear ->
# banded matrices, padded to 128-lane-aligned widths and packed into two slabs.
# --------------------------------------------------------------------------- #
def conv_to_band_matrix(w, L, dilation):
    """w: torch layout (Cout, Cin, K).  Causal conv (padding=(K-1)*d + Chomp1d):
         y[t, o] = sum_{i,k} w[o, i, k] * x[t - (K-1-k)*d, i]
       folded into an (L*Cin, L*Cout) band matrix acting on channels-last-flattened
       rows (flat index t*C + c)."""
    cout, cin, K = w.shape
    W = np.zeros((L * cin, L * cout), np.float32)
    for t in range(L):
        for k in range(K):
            tp = t - (K - 1 - k) * dilation
            if 0 <= tp < L:
                W[tp * cin:(tp + 1) * cin, t * cout:(t + 1) * cout] = w[:, :, k].T
    return W


def fold_params(blocks, linear, L, compute_dtype=jnp.bfloat16):
    """Fold TCN params into
         w_slab : (Rw, Wmax) compute_dtype -- every folded weight matrix at an
                  8-aligned row offset; all matrix widths padded to 128 multiples.
         b_slab : (Rb, 128k) float32       -- one bias row per bias vector.
       plus static `meta` (row offsets / shapes / per-level wiring) for the kernel.
       Weight-norm is folded explicitly (effective w = g*v/||v||) by init_tcn_params,
       so this function only sees effective conv weights.
       TODO(synk): for large L the dense band folding is O(L^2*Cin*Cout); switch to K
       shifted matmuls (pltpu.roll / pl.ds-sliced views) before scaling sequence length."""
    weights, biases = [], []
    meta = {"levels": [], "final": None}

    def add_w(m):
        weights.append(np.asarray(m, np.float32))
        return len(weights) - 1

    def add_b(v):
        biases.append(np.asarray(v, np.float32).reshape(-1))
        return len(biases) - 1

    def pad_to(m, rows, cols):
        out = np.zeros((rows, cols), np.float32)
        out[:m.shape[0], :m.shape[1]] = m
        return out

    in_size = blocks[0][0].shape[1]
    prev_pw = L * in_size          # level-0 input width == C (consumed via reassociation)
    for lvl, (w1, b1, w2, b2, wd, bd) in enumerate(blocks):
        d = 2 ** lvl
        cout, cin = w1.shape[0], w1.shape[1]
        width = L * cout
        pw = _pad128(width)
        rows_in = prev_pw
        band1 = pad_to(conv_to_band_matrix(w1, L, d), rows_in, pw)
        if wd is not None:
            down = pad_to(conv_to_band_matrix(wd, L, 1), rows_in, pw)
            bd_vec = np.tile(np.asarray(bd, np.float32), L)
            has_down = True
        elif lvl == 0:
            # Residual = input itself; fold it as an identity band so level 0 always
            # carries both branches in one fused 128-aligned matmul and the graph-mix
            # reassociation adj @ (x @ Wcat0) stays valid.
            down = pad_to(np.eye(L * cin, dtype=np.float32), rows_in, pw)
            bd_vec = np.zeros((width,), np.float32)
            has_down = True
        else:
            down, bd_vec, has_down = None, None, False

        wcat = np.concatenate([band1, down], axis=1) if has_down else band1
        band2 = pad_to(conv_to_band_matrix(w2, L, d), pw, pw)
        lm = {"wcat": add_w(wcat), "w2": add_w(band2),
              "b1": add_b(np.tile(np.asarray(b1, np.float32), L)),
              "b2": add_b(np.tile(np.asarray(b2, np.float32), L)),
              "has_down": has_down, "pw": pw}
        if has_down:
            lm["bd"] = add_b(bd_vec)
        meta["levels"].append(lm)
        prev_pw = pw

    wl, bl = linear
    c_last = wl.shape[1]
    fpw = _pad128(L)
    Wl = np.zeros((prev_pw, fpw), np.float32)
    for t in range(L):
        Wl[t * c_last:(t + 1) * c_last, t] = wl[0]
    meta["final"] = {"wl": add_w(Wl),
                     "bl": add_b(np.full((L,), np.float32(bl[0]), np.float32)),
                     "pw": fpw}

    slab_w = max(m.shape[1] for m in weights)                 # already 128-multiples
    offs, shapes, r = [], [], 0
    for m in weights:
        offs.append(r)
        shapes.append((int(m.shape[0]), int(m.shape[1])))
        r += -(-m.shape[0] // 8) * 8                          # 8-aligned row offsets
    w_slab = np.zeros((max(r, 8), slab_w), np.float32)
    for m, o in zip(weights, offs):
        w_slab[o:o + m.shape[0], :m.shape[1]] = m

    bpw = max(_pad128(v.shape[0]) for v in biases)
    b_slab = np.zeros((-(-len(biases) // 8) * 8, bpw), np.float32)
    for i, v in enumerate(biases):
        b_slab[i, :v.shape[0]] = v

    meta["w_offsets"] = tuple(offs)
    meta["w_shapes"] = tuple(shapes)
    return (jnp.asarray(w_slab, compute_dtype),
            jnp.asarray(b_slab, jnp.float32),
            meta)


# --------------------------------------------------------------------------- #
# Grid sizing: split the batch only when VMEM forces it.
# --------------------------------------------------------------------------- #
def _choose_steps(B, N, C, act_width, vmem_budget_bytes=24 << 20):
    """Smallest batch split whose per-step working set fits a conservative VMEM budget
    (v7x has only 64 MiB physical).  Never splits merely for 'parallelism': below
    ~256-512 rows per matmul the MXU is latency-bound and extra grid steps only add
    the ~0.35 us/step pipeline overhead."""
    def step_bytes(s):
        bt = B // s
        io = 2 * bt * N * (N + 2 * C) * 4          # double-buffered adj/x/out f32 blocks
        act = 6 * bt * N * act_width * 4           # live f32 activations in the body
        return io + act
    for s in range(1, B + 1):
        if B % s == 0 and step_bytes(s) <= vmem_budget_bytes:
            return s
    return B


# --------------------------------------------------------------------------- #
# Pallas kernel + wrapper.
# --------------------------------------------------------------------------- #
def dense_graph_tcn_forward(x, adj, w_slab, b_slab, meta, *,
                            compute_dtype=jnp.bfloat16, steps=None):
    """x: (B, N, C) f32, adj: (B, N, N) f32.  Returns (B, N, C) f32."""
    B, N, C = x.shape
    act_width = max([2 * lm["pw"] for lm in meta["levels"]] + [meta["final"]["pw"]])
    if steps is None:
        steps = _choose_steps(B, N, C, act_width)
    assert B % steps == 0
    bt = B // steps
    cdt = compute_dtype
    w_off, w_shp = meta["w_offsets"], meta["w_shapes"]

    def wslice(ref, idx):
        o = w_off[idx]
        r, c = w_shp[idx]
        return ref[o:o + r, :c]                    # static, 128-lane-aligned slice

    def brow(ref, idx, width):
        return ref[idx:idx + 1, :width]            # (1, width) f32 bias row

    def kernel(adj_ref, x_ref, w_ref, b_ref, o_ref):
        levels = meta["levels"]
        lv0 = levels[0]

        adj_f32 = adj_ref[...]                                   # (bt, N, N) f32
        x2 = x_ref[...].reshape(bt * N, C).astype(cdt)           # cast in-kernel (VPU)

        # Level-0 reassociation: (adj @ x) @ Wcat0 == adj @ (x @ Wcat0).
        # x @ Wcat0 emits a 128-lane-dense slab; the graph mix runs as one batched
        # f32 matmul (no bf16 rounding of adj, no lane-sparse adj@x intermediate).
        t = jnp.dot(x2, wslice(w_ref, lv0["wcat"]),
                    preferred_element_type=jnp.float32)          # (bt*N, 2*pw0) f32
        t3 = t.reshape(bt, N, t.shape[-1])
        h3 = jnp.einsum('bij,bjw->biw', adj_f32, t3,
                        preferred_element_type=jnp.float32)      # (bt, N, 2*pw0) f32
        h = h3.reshape(bt * N, t.shape[-1])

        a_f32 = None
        for li, lm in enumerate(levels):
            pw = lm["pw"]
            if li > 0:
                # conv1 + 1x1 downsample fused into one wide matmul (shared input).
                h = jnp.dot(a_f32.astype(cdt), wslice(w_ref, lm["wcat"]),
                            preferred_element_type=jnp.float32)
            out = jnp.maximum(h[:, :pw] + brow(b_ref, lm["b1"], pw), 0.0)
            # TODO(synk): nn.Dropout(p=0.3) is identity in eval mode; training-mode
            # parity would need pltpu.prng_* masks here and after the next ReLU.
            out = jnp.dot(out.astype(cdt), wslice(w_ref, lm["w2"]),
                          preferred_element_type=jnp.float32)
            out = jnp.maximum(out + brow(b_ref, lm["b2"], pw), 0.0)
            if lm["has_down"]:
                res = h[:, pw:2 * pw] + brow(b_ref, lm["bd"], pw)
            else:
                res = a_f32                       # cin == cout -> same padded width
            a_f32 = jnp.maximum(out + res, 0.0)   # f32 elementwise path (v5e-safe)

        fin = meta["final"]
        y = jnp.dot(a_f32.astype(cdt), wslice(w_ref, fin["wl"]),
                    preferred_element_type=jnp.float32)
        y = y + brow(b_ref, fin["bl"], fin["pw"])                # (bt*N, fpw) f32
        o_ref[...] = y[:, :C].reshape(bt, N, C)                  # leading-dim reshape

    # NOTE: on v7x, once bt*N per core exceeds ~512 rows, consider
    # pltpu.CORE_PARALLEL on the batch grid axis; at this size one grid step wins.
    return pl.pallas_call(
        kernel,
        out_shape=jax.ShapeDtypeStruct((B, N, C), jnp.float32),
        grid=(steps,),
        in_specs=[
            pl.BlockSpec((bt, N, N), lambda s: (s, 0, 0)),    # adj block (f32)
            pl.BlockSpec((bt, N, C), lambda s: (s, 0, 0)),    # x block   (f32)
            pl.BlockSpec(w_slab.shape, lambda s: (0, 0)),     # all folded weights
            pl.BlockSpec(b_slab.shape, lambda s: (0, 0)),     # all biases (f32)
        ],
        out_specs=pl.BlockSpec((bt, N, C), lambda s: (s, 0, 0)),
        compiler_params=pltpu.CompilerParams(
            dimension_semantics=("parallel",),
            # Well above the actual footprint; <= v7x's 64 MiB physical VMEM.
            vmem_limit_bytes=32 * 1024 * 1024,
        ),
    )(adj, x, w_slab, b_slab)


# --------------------------------------------------------------------------- #
# Deterministic parameter init (shapes of TCN(1, 1, n_channels, kernel_size)).
# --------------------------------------------------------------------------- #
def init_tcn_params(key, n_channels, kernel_size, in_size=1, out_size=1):
    blocks = []
    keys = iter(jax.random.split(key, 6 * len(n_channels) + 2))

    def conv_w(k, co, ci, K):
        # weight_norm(Conv1d).weight with TCN init v ~ N(0, 0.01); g = ||v|| => w == v.
        v = 0.01 * jax.random.normal(k, (co, ci, K), jnp.float32)
        g = jnp.sqrt(jnp.sum(v * v, axis=(1, 2), keepdims=True))
        return np.asarray(g * v / jnp.maximum(g, 1e-12), np.float32)

    def conv_b(k, co, ci, K):
        bound = 1.0 / np.sqrt(ci * K)
        return np.asarray(jax.random.uniform(k, (co,), jnp.float32, -bound, bound))

    for lvl, cout in enumerate(n_channels):
        cin = in_size if lvl == 0 else n_channels[lvl - 1]
        w1 = conv_w(next(keys), cout, cin, kernel_size)
        b1 = conv_b(next(keys), cout, cin, kernel_size)
        w2 = conv_w(next(keys), cout, cout, kernel_size)
        b2 = conv_b(next(keys), cout, cout, kernel_size)
        if cin != cout:
            wd = conv_w(next(keys), cout, cin, 1)
            bd = conv_b(next(keys), cout, cin, 1)
        else:
            next(keys); next(keys)
            wd, bd = None, None
        blocks.append((w1, b1, w2, b2, wd, bd))

    c_last = n_channels[-1]
    wl = np.asarray(0.01 * jax.random.normal(next(keys), (out_size, c_last), jnp.float32))
    bl = np.asarray(jax.random.uniform(next(keys), (out_size,), jnp.float32,
                                       -1.0 / np.sqrt(c_last), 1.0 / np.sqrt(c_last)))
    return blocks, (wl, bl)


# --------------------------------------------------------------------------- #
# Pure numpy reference (follows torch NCL Conv1d + Chomp1d semantics directly).
# --------------------------------------------------------------------------- #
def _ref_causal_conv(x, w, b, d):
    M, cin, L = x.shape
    cout, _, K = w.shape
    y = np.zeros((M, cout, L), np.float64)
    for t in range(L):
        for k in range(K):
            tp = t - (K - 1 - k) * d
            if tp < 0:
                continue
            y[:, :, t] += x[:, :, tp] @ w[:, :, k].T.astype(np.float64)
    return y + np.asarray(b, np.float64)[None, :, None]


def reference_forward(x, adj, blocks, linear):
    x = np.asarray(x, np.float64)
    adj = np.asarray(adj, np.float64)
    B, N, C = x.shape
    h = np.einsum('bij,bjc->bic', adj, x).reshape(B * N, C)
    a = h[:, None, :]                                   # (M, 1, C) NCL
    for lvl, (w1, b1, w2, b2, wd, bd) in enumerate(blocks):
        d = 2 ** lvl
        out = np.maximum(_ref_causal_conv(a, w1, b1, d), 0.0)
        out = np.maximum(_ref_causal_conv(out, w2, b2, d), 0.0)
        if wd is None:
            res = a
        else:
            res = (np.einsum('oi,mil->mol', wd[:, :, 0].astype(np.float64), a)
                   + np.asarray(bd, np.float64)[None, :, None])
        a = np.maximum(out + res, 0.0)
    wl, bl = linear
    y = np.einsum('mct,c->mt', a, wl[0].astype(np.float64)) + float(bl[0])
    return y.reshape(B, N, C)


if __name__ == "__main__":
    n_channels = [4, 8]        # DenseGraphTCNConv(n_channels=[4, 8])
    kernel_size = 15           # module default
    B, N, C = 2, 16, 16

    key = jax.random.PRNGKey(0)
    kx, ka, kp = jax.random.split(key, 3)
    x = jax.random.normal(kx, (B, N, C), jnp.float32)
    adj = jax.random.normal(ka, (B, N, N), jnp.float32)

    blocks, linear = init_tcn_params(kp, n_channels, kernel_size)
    w_slab, b_slab, meta = fold_params(blocks, linear, L=C, compute_dtype=jnp.bfloat16)

    out = dense_graph_tcn_forward(x, adj, w_slab, b_slab, meta,
                                  compute_dtype=jnp.bfloat16)
    out = jax.block_until_ready(out)

    ref = reference_forward(x, adj, blocks, linear)
    assert out.shape == (B, N, C) and out.dtype == jnp.float32
    # bf16 weight/activation matmul inputs (f32 accumulation, f32 adj graph mix,
    # f32 biases) vs. the f64 reference.
    np.testing.assert_allclose(np.asarray(out), ref, rtol=2e-2, atol=2e-2)
    print("KERNEL_OK")
</pallas_src>

<mosaic_0001>
module attributes {stable_mosaic.version = 11 : i64} {
  func.func @kernel(%arg0: i32, %arg1: memref<2x16x16xf32, #tpu.memory_space<vmem>>, %arg2: memref<2x16x16xf32, #tpu.memory_space<vmem>>, %arg3: memref<528x256xbf16, #tpu.memory_space<vmem>>, %arg4: memref<8x128xf32, #tpu.memory_space<vmem>>, %arg5: memref<2x16x16xf32, #tpu.memory_space<vmem>>) attributes {dimension_semantics = [#tpu.dimension_semantics<parallel>], iteration_bounds = array<i64: 1>, scalar_prefetch = 0 : i64, scratch_operands = 0 : i64, tpu.core_type = #tpu.core_type<tc>, window_params = [{transform_indices = @transform_0, window_bounds = array<i64: 2, 16, 16>}, {transform_indices = @transform_1, window_bounds = array<i64: 2, 16, 16>}, {pipeline_mode = #tpu.pipeline_mode<synchronous>, transform_indices = @transform_2, window_bounds = array<i64: 528, 256>}, {pipeline_mode = #tpu.pipeline_mode<synchronous>, transform_indices = @transform_3, window_bounds = array<i64: 8, 128>}, {transform_indices = @transform_4, window_bounds = array<i64: 2, 16, 16>}]} {
    %c0 = arith.constant 0 : index
    %c0_0 = arith.constant 0 : index
    %c0_1 = arith.constant 0 : index
    %0 = vector.load %arg1[%c0, %c0_0, %c0_1] : memref<2x16x16xf32, #tpu.memory_space<vmem>>, vector<2x16x16xf32>
    %c0_2 = arith.constant 0 : index
    %c0_3 = arith.constant 0 : index
    %c0_4 = arith.constant 0 : index
    %1 = vector.load %arg2[%c0_2, %c0_3, %c0_4] : memref<2x16x16xf32, #tpu.memory_space<vmem>>, vector<2x16x16xf32>
    %2 = vector.shape_cast %1 : vector<2x16x16xf32> to vector<32x16xf32>
    %3 = arith.truncf %2 : vector<32x16xf32> to vector<32x16xbf16>
    %c0_5 = arith.constant 0 : index
    %c0_6 = arith.constant 0 : index
    %4 = vector.load %arg3[%c0_5, %c0_6] : memref<528x256xbf16, #tpu.memory_space<vmem>>, vector<16x256xbf16>
    %cst = arith.constant dense<0.000000e+00> : vector<32x256xf32>
    %5 = tpu.matmul %3, %4, %cst {dimension_numbers = #tpu.dot_dimension_numbers<[1], [0], [0], [1], [0, 0, 1, 1], [], []>} : vector<32x16xbf16>, vector<16x256xbf16>, vector<32x256xf32> -> vector<32x256xf32>
    %6 = vector.shape_cast %5 : vector<32x256xf32> to vector<2x16x256xf32>
    "tpu.trace_start"() <{level = 10 : i32, message = "bij,bjw->biw"}> : () -> ()
    %cst_7 = arith.constant dense<0.000000e+00> : vector<2x16x256xf32>
    %7 = tpu.matmul %0, %6, %cst_7 {dimension_numbers = #tpu.dot_dimension_numbers<[2], [1], [1], [2], [0, 0, 0, 1, 1, 2], [0], [0]>} : vector<2x16x16xf32>, vector<2x16x256xf32>, vector<2x16x256xf32> -> vector<2x16x256xf32>
    "tpu.trace_stop"() : () -> ()
    %8 = vector.shape_cast %7 : vector<2x16x256xf32> to vector<32x256xf32>
    %9 = vector.extract_strided_slice %8 {offsets = [0, 0], sizes = [32, 128], strides = [1, 1]} : vector<32x256xf32> to vector<32x128xf32>
    %c0_8 = arith.constant 0 : index
    %c0_9 = arith.constant 0 : index
    %10 = vector.load %arg4[%c0_8, %c0_9] : memref<8x128xf32, #tpu.memory_space<vmem>>, vector<1x128xf32>
    %11 = vector.broadcast %10 : vector<1x128xf32> to vector<32x128xf32>
    %12 = arith.addf %9, %11 : vector<32x128xf32>
    %cst_10 = arith.constant 0.000000e+00 : f32
    %13 = vector.broadcast %cst_10 : f32 to vector<32x128xf32>
    %14 = arith.maximumf %12, %13 : vector<32x128xf32>
    %15 = arith.truncf %14 : vector<32x128xf32> to vector<32x128xbf16>
    %c16 = arith.constant 16 : index
    %c0_11 = arith.constant 0 : index
    %16 = vector.load %arg3[%c16, %c0_11] : memref<528x256xbf16, #tpu.memory_space<vmem>>, vector<128x128xbf16>
    %cst_12 = arith.constant dense<0.000000e+00> : vector<32x128xf32>
    %17 = tpu.matmul %15, %16, %cst_12 {dimension_numbers = #tpu.dot_dimension_numbers<[1], [0], [0], [1], [0, 0, 1, 1], [], []>} : vector<32x128xbf16>, vector<128x128xbf16>, vector<32x128xf32> -> vector<32x128xf32>
    %c1 = arith.constant 1 : index
    %c0_13 = arith.constant 0 : index
    %18 = vector.load %arg4[%c1, %c0_13] : memref<8x128xf32, #tpu.memory_space<vmem>>, vector<1x128xf32>
    %19 = vector.broadcast %18 : vector<1x128xf32> to vector<32x128xf32>
    %20 = arith.addf %17, %19 : vector<32x128xf32>
    %cst_14 = arith.constant 0.000000e+00 : f32
    %21 = vector.broadcast %cst_14 : f32 to vector<32x128xf32>
    %22 = arith.maximumf %20, %21 : vector<32x128xf32>
    %23 = vector.extract_strided_slice %8 {offsets = [0, 128], sizes = [32, 128], strides = [1, 1]} : vector<32x256xf32> to vector<32x128xf32>
    %c2 = arith.constant 2 : index
    %c0_15 = arith.constant 0 : index
    %24 = vector.load %arg4[%c2, %c0_15] : memref<8x128xf32, #tpu.memory_space<vmem>>, vector<1x128xf32>
    %25 = vector.broadcast %24 : vector<1x128xf32> to vector<32x128xf32>
    %26 = arith.addf %23, %25 : vector<32x128xf32>
    %27 = arith.addf %22, %26 : vector<32x128xf32>
    %cst_16 = arith.constant 0.000000e+00 : f32
    %28 = vector.broadcast %cst_16 : f32 to vector<32x128xf32>
    %29 = arith.maximumf %27, %28 : vector<32x128xf32>
    %30 = arith.truncf %29 : vector<32x128xf32> to vector<32x128xbf16>
    %c144 = arith.constant 144 : index
    %c0_17 = arith.constant 0 : index
    %31 = vector.load %arg3[%c144, %c0_17] : memref<528x256xbf16, #tpu.memory_space<vmem>>, vector<128x256xbf16>
    %cst_18 = arith.constant dense<0.000000e+00> : vector<32x256xf32>
    %32 = tpu.matmul %30, %31, %cst_18 {dimension_numbers = #tpu.dot_dimension_numbers<[1], [0], [0], [1], [0, 0, 1, 1], [], []>} : vector<32x128xbf16>, vector<128x256xbf16>, vector<32x256xf32> -> vector<32x256xf32>
    %33 = vector.extract_strided_slice %32 {offsets = [0, 0], sizes = [32, 128], strides = [1, 1]} : vector<32x256xf32> to vector<32x128xf32>
    %c3 = arith.constant 3 : index
    %c0_19 = arith.constant 0 : index
    %34 = vector.load %arg4[%c3, %c0_19] : memref<8x128xf32, #tpu.memory_space<vmem>>, vector<1x128xf32>
    %35 = vector.broadcast %34 : vector<1x128xf32> to vector<32x128xf32>
    %36 = arith.addf %33, %35 : vector<32x128xf32>
    %cst_20 = arith.constant 0.000000e+00 : f32
    %37 = vector.broadcast %cst_20 : f32 to vector<32x128xf32>
    %38 = arith.maximumf %36, %37 : vector<32x128xf32>
    %39 = arith.truncf %38 : vector<32x128xf32> to vector<32x128xbf16>
    %c272 = arith.constant 272 : index
    %c0_21 = arith.constant 0 : index
    %40 = vector.load %arg3[%c272, %c0_21] : memref<528x256xbf16, #tpu.memory_space<vmem>>, vector<128x128xbf16>
    %cst_22 = arith.constant dense<0.000000e+00> : vector<32x128xf32>
    %41 = tpu.matmul %39, %40, %cst_22 {dimension_numbers = #tpu.dot_dimension_numbers<[1], [0], [0], [1], [0, 0, 1, 1], [], []>} : vector<32x128xbf16>, vector<128x128xbf16>, vector<32x128xf32> -> vector<32x128xf32>
    %c4 = arith.constant 4 : index
    %c0_23 = arith.constant 0 : index
    %42 = vector.load %arg4[%c4, %c0_23] : memref<8x128xf32, #tpu.memory_space<vmem>>, vector<1x128xf32>
    %43 = vector.broadcast %42 : vector<1x128xf32> to vector<32x128xf32>
    %44 = arith.addf %41, %43 : vector<32x128xf32>
    %cst_24 = arith.constant 0.000000e+00 : f32
    %45 = vector.broadcast %cst_24 : f32 to vector<32x128xf32>
    %46 = arith.maximumf %44, %45 : vector<32x128xf32>
    %47 = vector.extract_strided_slice %32 {offsets = [0, 128], sizes = [32, 128], strides = [1, 1]} : vector<32x256xf32> to vector<32x128xf32>
    %c5 = arith.constant 5 : index
    %c0_25 = arith.constant 0 : index
    %48 = vector.load %arg4[%c5, %c0_25] : memref<8x128xf32, #tpu.memory_space<vmem>>, vector<1x128xf32>
    %49 = vector.broadcast %48 : vector<1x128xf32> to vector<32x128xf32>
    %50 = arith.addf %47, %49 : vector<32x128xf32>
    %51 = arith.addf %46, %50 : vector<32x128xf32>
    %cst_26 = arith.constant 0.000000e+00 : f32
    %52 = vector.broadcast %cst_26 : f32 to vector<32x128xf32>
    %53 = arith.maximumf %51, %52 : vector<32x128xf32>
    %54 = arith.truncf %53 : vector<32x128xf32> to vector<32x128xbf16>
    %c400 = arith.constant 400 : index
    %c0_27 = arith.constant 0 : index
    %55 = vector.load %arg3[%c400, %c0_27] : memref<528x256xbf16, #tpu.memory_space<vmem>>, vector<128x128xbf16>
    %cst_28 = arith.constant dense<0.000000e+00> : vector<32x128xf32>
    %56 = tpu.matmul %54, %55, %cst_28 {dimension_numbers = #tpu.dot_dimension_numbers<[1], [0], [0], [1], [0, 0, 1, 1], [], []>} : vector<32x128xbf16>, vector<128x128xbf16>, vector<32x128xf32> -> vector<32x128xf32>
    %c6 = arith.constant 6 : index
    %c0_29 = arith.constant 0 : index
    %57 = vector.load %arg4[%c6, %c0_29] : memref<8x128xf32, #tpu.memory_space<vmem>>, vector<1x128xf32>
    %58 = vector.broadcast %57 : vector<1x128xf32> to vector<32x128xf32>
    %59 = arith.addf %56, %58 : vector<32x128xf32>
    %60 = vector.extract_strided_slice %59 {offsets = [0, 0], sizes = [32, 16], strides = [1, 1]} : vector<32x128xf32> to vector<32x16xf32>
    %61 = vector.shape_cast %60 : vector<32x16xf32> to vector<2x16x16xf32>
    %c0_30 = arith.constant 0 : index
    %c0_31 = arith.constant 0 : index
    %c0_32 = arith.constant 0 : index
    %62 = vector.load %arg5[%c0_30, %c0_31, %c0_32] : memref<2x16x16xf32, #tpu.memory_space<vmem>>, vector<2x16x16xf32>
    tpu.vector_store %arg5[%c0_30, %c0_31, %c0_32], %61 {strides = array<i32>} : memref<2x16x16xf32, #tpu.memory_space<vmem>>, vector<2x16x16xf32>,
    return
  }
  func.func @transform_0(%arg0: i32) -> (i32, i32, i32) {
    %c0_i32 = arith.constant 0 : i32
    %c0_i32_0 = arith.constant 0 : i32
    %c0_i32_1 = arith.constant 0 : i32
    return %arg0, %c0_i32, %c0_i32_0 : i32, i32, i32
  }
  func.func @transform_1(%arg0: i32) -> (i32, i32, i32) {
    %c0_i32 = arith.constant 0 : i32
    %c0_i32_0 = arith.constant 0 : i32
    %c0_i32_1 = arith.constant 0 : i32
    return %arg0, %c0_i32, %c0_i32_0 : i32, i32, i32
  }
  func.func @transform_2(%arg0: i32) -> (i32, i32) {
    %c0_i32 = arith.constant 0 : i32
    %c0_i32_0 = arith.constant 0 : i32
    %c0_i32_1 = arith.constant 0 : i32
    return %c0_i32, %c0_i32_0 : i32, i32
  }
  func.func @transform_3(%arg0: i32) -> (i32, i32) {
    %c0_i32 = arith.constant 0 : i32
    %c0_i32_0 = arith.constant 0 : i32
    %c0_i32_1 = arith.constant 0 : i32
    return %c0_i32, %c0_i32_0 : i32, i32
  }
  func.func @transform_4(%arg0: i32) -> (i32, i32, i32) {
    %c0_i32 = arith.constant 0 : i32
    %c0_i32_0 = arith.constant 0 : i32
    %c0_i32_1 = arith.constant 0 : i32
    return %arg0, %c0_i32, %c0_i32_0 : i32, i32, i32
  }
}

</mosaic_0001>

<llo_original>
// kernel: tpu_custom_call.1
$region0: #{tpu_custom_call.1}
  #allocation0 [shape = 'u32[]', space=smem, size = 0x4, offset = 0x4, fixed_abs, tag = 'smem constant byte address 0x4 - core index']
  #allocation1 [shape = 'u32[144,128]{1,0:T(1,128)}', space=vmem, size = 0x12000, scoped, tag = 'internal scratch']
  %s0 = inlined_call_operand.hbm [shape: f32[2,16,16], index: 0, kind: input, shape index: {}]
  %s1 = inlined_call_operand.hbm [shape: f32[2,16,16], index: 1, kind: input, shape index: {}]
  %s2 = inlined_call_operand.hbm [shape: bf16[528,256], index: 2, kind: input, shape index: {}]
  %s3 = inlined_call_operand.hbm [shape: f32[8,128], index: 3, kind: input, shape index: {}]
  %s4 = inlined_call_operand.hbm [shape: f32[2,16,16], index: 4, kind: output, shape index: {}]
  %s5 = sld [smem:[#allocation0]]
  $region42: #{tpu_custom_call.1} parent=0
    _
  %s7 = ssub.s32 1, %s5
  %s8 = scalar_select 0, %s7, %s5
  $region1: #{tpu_custom_call.1} parent=0
    #allocation2 [shape = 'u8[16384]{0}', space=vmem, size = 0x4000, scoped, tag = 'input window, operand 0, single buffered']
    #allocation3 [shape = 's32[1]{0}', space=sflag, size = 0x4, scoped, tag = 'scoped memory for tpu_custom_call.1']
    #allocation4 [shape = 's32[1]{0}', space=sflag, size = 0x4, scoped, tag = 'scoped memory for tpu_custom_call.1']
    #allocation5 [shape = 'u8[16384]{0}', space=vmem, size = 0x4000, scoped, tag = 'input window, operand 1, single buffered']
    #allocation6 [shape = 's32[1]{0}', space=sflag, size = 0x4, scoped, tag = 'scoped memory for tpu_custom_call.1']
    #allocation7 [shape = 'u8[270336]{0}', space=vmem, size = 0x42000, scoped, tag = 'input window, operand 2, single buffered']
    #allocation8 [shape = 'u8[4096]{0}', space=vmem, size = 0x1000, scoped, tag = 'input window, operand 3, single buffered']
    #allocation9 [shape = 's32[1]{0}', space=sflag, size = 0x4, scoped, tag = 'scoped memory for tpu_custom_call.1']
    #allocation10 [shape = 'u8[16384]{0}', space=vmem, size = 0x4000, scoped, tag = 'output window, operand 0, single buffered']
    %9 = vsyncpa [#allocation3], 0
    %10 = vsyncpa [#allocation6], 0
    %11 = vsyncpa [#allocation9], 0
    %12 = vsyncpa [#allocation4], 0
    // Predicated region
    $region2: #{tpu_custom_call.1} parent=1 // pred_check
      _
    $region3: #{tpu_custom_call.1} parent=1 // pred_check_branch
      %14 = sbr.rel (0) target = $region5
    $region4: #{tpu_custom_call.1} parent=1 // pred_region
      %s16 = ssub.s32 512, 512
      %17 = vsyncadd [#allocation3], %s16
      %s18 = sshll.u32 [#allocation2], 4
      %s19 = int_to_ptr.vmem [resolvable:$true] %s18
      %24 = dma.hbm_to_vmem [thread:$0]  %s0, 512, %s19, [#allocation3], 128, 128, 8
    $region5: #{tpu_custom_call.1} parent=1 // pred_fallthru
      _
    // Predicated region
    $region6: #{tpu_custom_call.1} parent=1 // pred_check
      _
    $region7: #{tpu_custom_call.1} parent=1 // pred_check_branch
      %26 = sbr.rel (0) target = $region9
    $region8: #{tpu_custom_call.1} parent=1 // pred_region
      %s28 = ssub.s32 512, 512
      %29 = vsyncadd [#allocation6], %s28
      %s30 = sshll.u32 [#allocation5], 4
      %s31 = int_to_ptr.vmem [resolvable:$true] %s30
      %36 = dma.hbm_to_vmem [thread:$0]  %s1, 512, %s31, [#allocation6], 128, 128, 8
    $region9: #{tpu_custom_call.1} parent=1 // pred_fallthru
      _
    // Predicated region
    $region10: #{tpu_custom_call.1} parent=1 // pred_check
      _
    $region11: #{tpu_custom_call.1} parent=1 // pred_check_branch
      %38 = sbr.rel (0) target = $region13
    $region12: #{tpu_custom_call.1} parent=1 // pred_region
      %s40 = ssub.s32 8448, 8448
      %41 = vsyncadd [#allocation6], %s40
      %s42 = sshll.u32 [#allocation7], 4
      %s43 = int_to_ptr.vmem [resolvable:$true] %s42
      %48 = dma.hbm_to_vmem [thread:$0]  %s2, 8448, %s43, [#allocation6], 128, 128, 8
    $region13: #{tpu_custom_call.1} parent=1 // pred_fallthru
      _
    // Predicated region
    $region14: #{tpu_custom_call.1} parent=1 // pred_check
      _
    $region15: #{tpu_custom_call.1} parent=1 // pred_check_branch
      %50 = sbr.rel (0) target = $region17
    $region16: #{tpu_custom_call.1} parent=1 // pred_region
      %s52 = ssub.s32 128, 128
      %53 = vsyncadd [#allocation9], %s52
      %s55 = sshll.u32 [#allocation8], 4
      %s56 = int_to_ptr.vmem [resolvable:$true] %s55
      %58 = dma.hbm_to_vmem [thread:$0]  %s3, 128, %s56, [#allocation9]
    $region17: #{tpu_custom_call.1} parent=1 // pred_fallthru
      _
    // Predicated region
    $region18: #{tpu_custom_call.1} parent=1 // pred_check
      _
    $region19: #{tpu_custom_call.1} parent=1 // pred_check_branch
      %60 = sbr.rel (0) target = $region21
    $region20: #{tpu_custom_call.1} parent=1 // pred_region
      %61 = dma.done [#allocation3], 512
    $region21: #{tpu_custom_call.1} parent=1 // pred_fallthru
      _
    // Predicated region
    $region22: #{tpu_custom_call.1} parent=1 // pred_check
      _
    $region23: #{tpu_custom_call.1} parent=1 // pred_check_branch
      %63 = sbr.rel (0) target = $region25
    $region24: #{tpu_custom_call.1} parent=1 // pred_region
      %64 = dma.done [#allocation6], 512
    $region25: #{tpu_custom_call.1} parent=1 // pred_fallthru
      _
    // Predicated region
    $region26: #{tpu_custom_call.1} parent=1 // pred_check
      _
    $region27: #{tpu_custom_call.1} parent=1 // pred_check_branch
      %66 = sbr.rel (0) target = $region29
    $region28: #{tpu_custom_call.1} parent=1 // pred_region
      %67 = dma.done [#allocation6], 8448
    $region29: #{tpu_custom_call.1} parent=1 // pred_fallthru
      _
    // Predicated region
    $region30: #{tpu_custom_call.1} parent=1 // pred_check
      _
    $region31: #{tpu_custom_call.1} parent=1 // pred_check_branch
      %69 = sbr.rel (0) target = $region33
    $region32: #{tpu_custom_call.1} parent=1 // pred_region
      %70 = dma.done [#allocation9], 128
    $region33: #{tpu_custom_call.1} parent=1 // pred_fallthru
      _
    %v72 = vld [vmem:[#allocation2] sm:$0xff]
    %v73 = vld [vmem:[#allocation2 + $0x8] sm:$0xff]
    %v74 = vld [vmem:[#allocation2 + $0x10] sm:$0xff]
    %v75 = vld [vmem:[#allocation2 + $0x18] sm:$0xff]
    %v76 = vld [vmem:[#allocation5] sm:$0xff]
    %v77 = vld [vmem:[#allocation5 + $0x8] sm:$0xff]
    %v78 = vld [vmem:[#allocation5 + $0x10] sm:$0xff]
    %v79 = vld [vmem:[#allocation5 + $0x18] sm:$0xff]
    %v80 = vpack.c.bf16 %v77, %v76
    %v81 = vpack.c.bf16 %v79, %v78
    %v82 = vld [vmem:[#allocation7] sm:$0xff]
    %v83 = vld [vmem:[#allocation7 + $0x8] sm:$0xff]
    %v86 = vunpack.c.l.b16 %v82
    %v87 = vunpack.c.h.b16 %v82
    %v88 = vunpack.c.l.b16 %v83
    %v89 = vunpack.c.h.b16 %v83
    %v90 = vpack.c.b16 %v88, %v86
    %v91 = vpack.c.b16 %v89, %v87
    %vm94 = vcmask 130048
    %v96 = vsel %vm94, %v80, 0
    %v99 = vsel %vm94, %v81, 0
    %101 = vmatprep.subr.bf16.mxu0 0
    %102 = vmatpush1.bf16.msra.mxu0 0
    %103 = vmatprep.subr.bf16.mxu0 0
    %104 = vmatpush1.bf16.msra.mxu0 0
    %105 = vmatprep.subr.bf16.mxu0 0
    %106 = vmatpush1.bf16.msra.mxu0 0
    %107 = vmatprep.subr.bf16.mxu0 0
    %108 = vmatpush1.bf16.msra.mxu0 0
    %109 = vmatprep.subr.bf16.mxu0 0
    %110 = vmatpush1.bf16.msra.mxu0 0
    %111 = vmatprep.subr.bf16.mxu0 0
    %112 = vmatpush1.bf16.msra.mxu0 0
    %113 = vmatprep.subr.bf16.mxu0 0
    %114 = vmatpush1.bf16.msra.mxu0 0
    %115 = vmatprep.subr.bf16.mxu0 %v91
    %116 = vmatpush1.bf16.msra.mxu0 %v90
    %117 = vmatprep.subr.bf16.mxu0 0
    %118 = vmatpush2.bf16.msra.mxu0 0
    %119 = vmatprep.subr.bf16.mxu0 0
    %120 = vmatpush2.bf16.msra.mxu0 0
    %121 = vmatprep.subr.bf16.mxu0 0
    %122 = vmatpush2.bf16.msra.mxu0 0
    %123 = vmatprep.subr.bf16.mxu0 0
    %124 = vmatpush2.bf16.msra.mxu0 0
    %125 = vmatprep.subr.bf16.mxu0 0
    %126 = vmatpush2.bf16.msra.mxu0 0
    %127 = vmatprep.subr.bf16.mxu0 0
    %128 = vmatpush2.bf16.msra.mxu0 0
    %129 = vmatprep.subr.bf16.mxu0 0
    %130 = vmatpush2.bf16.msra.mxu0 0
    %131 = vmatprep.subr.bf16.mxu0 0
    %132 = vmatpush2.bf16.msra.mxu0 0
    %133 = vmatprep.mubr.bf16.mxu0 0
    %134 = vmatmul.mubr.bf16.gmra.mxu0 %v96
    %v135 = vpop.f32.mrf.mxu0
    %v136 = vadd.f32 0.0, %v135
    %v137 = vpop.f32.mrf.mxu0
    %v138 = vadd.f32 0.0, %v137
    %v139 = vpop.f32.mrf.mxu0
    %v140 = vadd.f32 0.0, %v139
    %v141 = vpop.f32.mrf.mxu0
    %v142 = vadd.f32 0.0, %v141
    %143 = vmatprep.mubr.bf16.mxu0 0
    %144 = vmatmul.mubr.bf16.gmra.mxu0 %v99
    %v145 = vpop.f32.mrf.mxu0
    %v146 = vadd.f32 0.0, %v145
    %v147 = vpop.f32.mrf.mxu0
    %v148 = vadd.f32 0.0, %v147
    %v149 = vpop.f32.mrf.mxu0
    %v150 = vadd.f32 0.0, %v149
    %v151 = vpop.f32.mrf.mxu0
    %v152 = vadd.f32 0.0, %v151
    %153 = vdwg.mxu0
    %v155 = vsel %vm94, %v72, 0
    %v158 = vsel %vm94, %v73, 0
    %160 = vmatprep.subr.mxu0 0.0
    %161 = vmatpush1.msra.mxu0 0.0
    %162 = vmatprep.subr.mxu0 0.0
    %163 = vmatpush1.msra.mxu0 0.0
    %164 = vmatprep.subr.mxu0 0.0
    %165 = vmatpush1.msra.mxu0 0.0
    %166 = vmatprep.subr.mxu0 0.0
    %167 = vmatpush1.msra.mxu0 0.0
    %168 = vmatprep.subr.mxu0 0.0
    %169 = vmatpush1.msra.mxu0 0.0
    %170 = vmatprep.subr.mxu0 0.0
    %171 = vmatpush1.msra.mxu0 0.0
    %172 = vmatprep.subr.mxu0 0.0
    %173 = vmatpush1.msra.mxu0 0.0
    %174 = vmatprep.subr.mxu0 0.0
    %175 = vmatpush1.msra.mxu0 0.0
    %176 = vmatprep.subr.mxu0 0.0
    %177 = vmatpush1.msra.mxu0 0.0
    %178 = vmatprep.subr.mxu0 0.0
    %179 = vmatpush1.msra.mxu0 0.0
    %180 = vmatprep.subr.mxu0 0.0
    %181 = vmatpush1.msra.mxu0 0.0
    %182 = vmatprep.subr.mxu0 0.0
    %183 = vmatpush1.msra.mxu0 0.0
    %184 = vmatprep.subr.mxu0 0.0
    %185 = vmatpush1.msra.mxu0 0.0
    %186 = vmatprep.subr.mxu0 0.0
    %187 = vmatpush1.msra.mxu0 0.0
    %188 = vmatprep.subr.mxu0 %v142
    %189 = vmatpush1.msra.mxu0 %v140
    %190 = vmatprep.subr.mxu0 %v138
    %191 = vmatpush1.msra.mxu0 %v136
    %192 = vmatprep.subr.mxu0 0.0
    %193 = vmatpush2.msra.mxu0 0.0
    %194 = vmatprep.subr.mxu0 0.0
    %195 = vmatpush2.msra.mxu0 0.0
    %196 = vmatprep.subr.mxu0 0.0
    %197 = vmatpush2.msra.mxu0 0.0
    %198 = vmatprep.subr.mxu0 0.0
    %199 = vmatpush2.msra.mxu0 0.0
    %200 = vmatprep.subr.mxu0 0.0
    %201 = vmatpush2.msra.mxu0 0.0
    %202 = vmatprep.subr.mxu0 0.0
    %203 = vmatpush2.msra.mxu0 0.0
    %204 = vmatprep.subr.mxu0 0.0
    %205 = vmatpush2.msra.mxu0 0.0
    %206 = vmatprep.subr.mxu0 0.0
    %207 = vmatpush2.msra.mxu0 0.0
    %208 = vmatprep.subr.mxu0 0.0
    %209 = vmatpush2.msra.mxu0 0.0
    %210 = vmatprep.subr.mxu0 0.0
    %211 = vmatpush2.msra.mxu0 0.0
    %212 = vmatprep.subr.mxu0 0.0
    %213 = vmatpush2.msra.mxu0 0.0
    %214 = vmatprep.subr.mxu0 0.0
    %215 = vmatpush2.msra.mxu0 0.0
    %216 = vmatprep.subr.mxu0 0.0
    %217 = vmatpush2.msra.mxu0 0.0
    %218 = vmatprep.subr.mxu0 0.0
    %219 = vmatpush2.msra.mxu0 0.0
    %220 = vmatprep.subr.mxu0 0.0
    %221 = vmatpush2.msra.mxu0 0.0
    %222 = vmatprep.subr.mxu0 0.0
    %223 = vmatpush2.msra.mxu0 0.0
    %224 = vmatprep.mubr.f32.mxu0 0.0
    %225 = vmatmul.mubr.f32.gmra.mxu0 %v155
    %v226 = vpop.f32.mrf.mxu0
    %v227 = vadd.f32 0.0, %v226
    %v228 = vpop.f32.mrf.mxu0
    %v229 = vadd.f32 0.0, %v228
    %230 = vmatprep.mubr.f32.mxu0 0.0
    %231 = vmatmul.mubr.f32.gmra.mxu0 %v158
    %v232 = vpop.f32.mrf.mxu0
    %v233 = vadd.f32 0.0, %v232
    %v234 = vpop.f32.mrf.mxu0
    %v235 = vadd.f32 0.0, %v234
    %236 = vdwg.mxu0
    %v238 = vsel %vm94, %v74, 0
    %v241 = vsel %vm94, %v75, 0
    %243 = vmatprep.subr.mxu0 0.0
    %244 = vmatpush1.msra.mxu0 0.0
    %245 = vmatprep.subr.mxu0 0.0
    %246 = vmatpush1.msra.mxu0 0.0
    %247 = vmatprep.subr.mxu0 0.0
    %248 = vmatpush1.msra.mxu0 0.0
    %249 = vmatprep.subr.mxu0 0.0
    %250 = vmatpush1.msra.mxu0 0.0
    %251 = vmatprep.subr.mxu0 0.0
    %252 = vmatpush1.msra.mxu0 0.0
    %253 = vmatprep.subr.mxu0 0.0
    %254 = vmatpush1.msra.mxu0 0.0
    %255 = vmatprep.subr.mxu0 0.0
    %256 = vmatpush1.msra.mxu0 0.0
    %257 = vmatprep.subr.mxu0 0.0
    %258 = vmatpush1.msra.mxu0 0.0
    %259 = vmatprep.subr.mxu0 0.0
    %260 = vmatpush1.msra.mxu0 0.0
    %261 = vmatprep.subr.mxu0 0.0
    %262 = vmatpush1.msra.mxu0 0.0
    %263 = vmatprep.subr.mxu0 0.0
    %264 = vmatpush1.msra.mxu0 0.0
    %265 = vmatprep.subr.mxu0 0.0
    %266 = vmatpush1.msra.mxu0 0.0
    %267 = vmatprep.subr.mxu0 0.0
    %268 = vmatpush1.msra.mxu0 0.0
    %269 = vmatprep.subr.mxu0 0.0
    %270 = vmatpush1.msra.mxu0 0.0
    %271 = vmatprep.subr.mxu0 %v152
    %272 = vmatpush1.msra.mxu0 %v150
    %273 = vmatprep.subr.mxu0 %v148
    %274 = vmatpush1.msra.mxu0 %v146
    %275 = vmatprep.subr.mxu0 0.0
    %276 = vmatpush2.msra.mxu0 0.0
    %277 = vmatprep.subr.mxu0 0.0
    %278 = vmatpush2.msra.mxu0 0.0
    %279 = vmatprep.subr.mxu0 0.0
    %280 = vmatpush2.msra.mxu0 0.0
    %281 = vmatprep.subr.mxu0 0.0
    %282 = vmatpush2.msra.mxu0 0.0
    %283 = vmatprep.subr.mxu0 0.0
    %284 = vmatpush2.msra.mxu0 0.0
    %285 = vmatprep.subr.mxu0 0.0
    %286 = vmatpush2.msra.mxu0 0.0
    %287 = vmatprep.subr.mxu0 0.0
    %288 = vmatpush2.msra.mxu0 0.0
    %289 = vmatprep.subr.mxu0 0.0
    %290 = vmatpush2.msra.mxu0 0.0
    %291 = vmatprep.subr.mxu0 0.0
    %292 = vmatpush2.msra.mxu0 0.0
    %293 = vmatprep.subr.mxu0 0.0
    %294 = vmatpush2.msra.mxu0 0.0
    %295 = vmatprep.subr.mxu0 0.0
    %296 = vmatpush2.msra.mxu0 0.0
    %297 = vmatprep.subr.mxu0 0.0
    %298 = vmatpush2.msra.mxu0 0.0
    %299 = vmatprep.subr.mxu0 0.0
    %300 = vmatpush2.msra.mxu0 0.0
    %301 = vmatprep.subr.mxu0 0.0
    %302 = vmatpush2.msra.mxu0 0.0
    %303 = vmatprep.subr.mxu0 0.0
    %304 = vmatpush2.msra.mxu0 0.0
    %305 = vmatprep.subr.mxu0 0.0
    %306 = vmatpush2.msra.mxu0 0.0
    %307 = vmatprep.mubr.f32.mxu0 0.0
    %308 = vmatmul.mubr.f32.gmra.mxu0 %v238
    %v309 = vpop.f32.mrf.mxu0
    %v310 = vadd.f32 0.0, %v309
    %v311 = vpop.f32.mrf.mxu0
    %v312 = vadd.f32 0.0, %v311
    %313 = vmatprep.mubr.f32.mxu0 0.0
    %314 = vmatmul.mubr.f32.gmra.mxu0 %v241
    %v315 = vpop.f32.mrf.mxu0
    %v316 = vadd.f32 0.0, %v315
    %v317 = vpop.f32.mrf.mxu0
    %v318 = vadd.f32 0.0, %v317
    %319 = vdwg.mxu0
    %v320 = vld [vmem:[#allocation8] sm:$0x1]
    %v321 = vlaneseq
    %v322 = vshrl.u32 %v321, 7
    %v323 = vsub.s32 0, %v322
    %v324 = vrot.slane %v320, %v323
    %v325 = vadd.f32 %v227, %v324
    %v326 = vadd.f32 %v233, %v324
    %v327 = vadd.f32 %v310, %v324
    %v328 = vadd.f32 %v316, %v324
    %v329 = vmax.f32 %v325, 0.0
    %v330 = vmax.f32 %v326, 0.0
    %v331 = vmax.f32 %v327, 0.0
    %v332 = vmax.f32 %v328, 0.0
    %v333 = vpack.c.bf16 %v330, %v329
    %v334 = vpack.c.bf16 %v332, %v331
    %v335 = vld [vmem:[#allocation7 + $0x10] sm:$0xf]
    %v336 = vld [vmem:[#allocation7 + $0x18] sm:$0xf]
    %v337 = vld [vmem:[#allocation7 + $0x20] sm:$0xf]
    %v338 = vld [vmem:[#allocation7 + $0x28] sm:$0xf]
    %v339 = vld [vmem:[#allocation7 + $0x30] sm:$0xf]
    %v340 = vld [vmem:[#allocation7 + $0x38] sm:$0xf]
    %v341 = vld [vmem:[#allocation7 + $0x40] sm:$0xf]
    %v342 = vld [vmem:[#allocation7 + $0x48] sm:$0xf]
    %v343 = vld [vmem:[#allocation7 + $0x50] sm:$0xf]
    %v344 = vld [vmem:[#allocation7 + $0x58] sm:$0xf]
    %v345 = vld [vmem:[#allocation7 + $0x60] sm:$0xf]
    %v346 = vld [vmem:[#allocation7 + $0x68] sm:$0xf]
    %v347 = vld [vmem:[#allocation7 + $0x70] sm:$0xf]
    %v348 = vld [vmem:[#allocation7 + $0x78] sm:$0xf]
    %v349 = vld [vmem:[#allocation7 + $0x80] sm:$0xf]
    %v350 = vld [vmem:[#allocation7 + $0x88] sm:$0xf]
    %v351 = vld [vmem:[#allocation8 + $0x1] sm:$0x1]
    %v352 = vlaneseq
    %v353 = vshrl.u32 %v352, 7
    %v354 = vsub.s32 0, %v353
    %v355 = vrot.slane %v351, %v354
    %v372 = vunpack.c.l.b16 %v335
    %v373 = vunpack.c.l.b16 %v336
    %v374 = vunpack.c.l.b16 %v337
    %v375 = vunpack.c.l.b16 %v338
    %v376 = vunpack.c.l.b16 %v339
    %v377 = vunpack.c.l.b16 %v340
    %v378 = vunpack.c.l.b16 %v341
    %v379 = vunpack.c.l.b16 %v342
    %v380 = vunpack.c.l.b16 %v343
    %v381 = vunpack.c.l.b16 %v344
    %v382 = vunpack.c.l.b16 %v345
    %v383 = vunpack.c.l.b16 %v346
    %v384 = vunpack.c.l.b16 %v347
    %v385 = vunpack.c.l.b16 %v348
    %v386 = vunpack.c.l.b16 %v349
    %v387 = vunpack.c.l.b16 %v350
    %v388 = vpack.c.b16 %v373, %v372
    %v389 = vpack.c.b16 %v375, %v374
    %v390 = vpack.c.b16 %v377, %v376
    %v391 = vpack.c.b16 %v379, %v378
    %v392 = vpack.c.b16 %v381, %v380
    %v393 = vpack.c.b16 %v383, %v382
    %v394 = vpack.c.b16 %v385, %v384
    %v395 = vpack.c.b16 %v387, %v386
    %404 = vmatprep.subr.bf16.mxu0 0
    %405 = vmatpush1.bf16.msra.mxu0 %v395
    %406 = vmatprep.subr.bf16.mxu0 0
    %407 = vmatpush1.bf16.msra.mxu0 %v394
    %408 = vmatprep.subr.bf16.mxu0 0
    %409 = vmatpush1.bf16.msra.mxu0 %v393
    %410 = vmatprep.subr.bf16.mxu0 0
    %411 = vmatpush1.bf16.msra.mxu0 %v392
    %412 = vmatprep.subr.bf16.mxu0 0
    %413 = vmatpush1.bf16.msra.mxu0 %v391
    %414 = vmatprep.subr.bf16.mxu0 0
    %415 = vmatpush1.bf16.msra.mxu0 %v390
    %416 = vmatprep.subr.bf16.mxu0 0
    %417 = vmatpush1.bf16.msra.mxu0 %v389
    %418 = vmatprep.subr.bf16.mxu0 0
    %419 = vmatpush1.bf16.msra.mxu0 %v388
    %420 = vmatprep.subr.bf16.mxu0 0
    %421 = vmatpush2.bf16.msra.mxu0 0
    %422 = vmatprep.subr.bf16.mxu0 0
    %423 = vmatpush2.bf16.msra.mxu0 0
    %424 = vmatprep.subr.bf16.mxu0 0
    %425 = vmatpush2.bf16.msra.mxu0 0
    %426 = vmatprep.subr.bf16.mxu0 0
    %427 = vmatpush2.bf16.msra.mxu0 0
    %428 = vmatprep.subr.bf16.mxu0 0
    %429 = vmatpush2.bf16.msra.mxu0 0
    %430 = vmatprep.subr.bf16.mxu0 0
    %431 = vmatpush2.bf16.msra.mxu0 0
    %432 = vmatprep.subr.bf16.mxu0 0
    %433 = vmatpush2.bf16.msra.mxu0 0
    %434 = vmatprep.subr.bf16.mxu0 0
    %435 = vmatpush2.bf16.msra.mxu0 0
    %436 = vmatprep.mubr.bf16.mxu0 0
    %437 = vmatmul.mubr.bf16.gmra.mxu0 %v333
    %v438 = vpop.f32.mrf.mxu0
    %v439 = vadd.f32 %v355, %v438
    %v440 = vpop.f32.mrf.mxu0
    %v441 = vpop.f32.mrf.mxu0
    %v442 = vadd.f32 %v355, %v441
    %v443 = vpop.f32.mrf.mxu0
    %444 = vmatprep.mubr.bf16.mxu0 0
    %445 = vmatmul.mubr.bf16.gmra.mxu0 %v334
    %v446 = vpop.f32.mrf.mxu0
    %v447 = vadd.f32 %v355, %v446
    %v448 = vpop.f32.mrf.mxu0
    %v449 = vpop.f32.mrf.mxu0
    %v450 = vadd.f32 %v355, %v449
    %v451 = vpop.f32.mrf.mxu0
    %452 = vdwg.mxu0
    %v453 = vmax.f32 %v439, 0.0
    %v454 = vmax.f32 %v442, 0.0
    %v455 = vmax.f32 %v447, 0.0
    %v456 = vmax.f32 %v450, 0.0
    %v457 = vld [vmem:[#allocation8 + $0x2] sm:$0x1]
    %v458 = vlaneseq
    %v459 = vshrl.u32 %v458, 7
    %v460 = vsub.s32 0, %v459
    %v461 = vrot.slane %v457, %v460
    %v462 = vadd.f32 %v229, %v461
    %v463 = vadd.f32 %v235, %v461
    %v464 = vadd.f32 %v312, %v461
    %v465 = vadd.f32 %v318, %v461
    %v466 = vadd.f32 %v453, %v462
    %v467 = vadd.f32 %v454, %v463
    %v468 = vadd.f32 %v455, %v464
    %v469 = vadd.f32 %v456, %v465
    %v470 = vmax.f32 %v466, 0.0
    %v471 = vmax.f32 %v467, 0.0
    %v472 = vmax.f32 %v468, 0.0
    %v473 = vmax.f32 %v469, 0.0
    %v474 = vpack.c.bf16 %v471, %v470
    %v475 = vpack.c.bf16 %v473, %v472
    %v476 = vld [vmem:[#allocation7 + $0x90] sm:$0xff]
    %v477 = vld [vmem:[#allocation7 + $0x98] sm:$0xff]
    %v478 = vld [vmem:[#allocation7 + $0xa0] sm:$0xff]
    %v479 = vld [vmem:[#allocation7 + $0xa8] sm:$0xff]
    %v480 = vld [vmem:[#allocation7 + $0xb0] sm:$0xff]
    %v481 = vld [vmem:[#allocation7 + $0xb8] sm:$0xff]
    %v482 = vld [vmem:[#allocation7 + $0xc0] sm:$0xff]
    %v483 = vld [vmem:[#allocation7 + $0xc8] sm:$0xff]
    %v484 = vld [vmem:[#allocation7 + $0xd0] sm:$0xff]
    %v485 = vld [vmem:[#allocation7 + $0xd8] sm:$0xff]
    %v486 = vld [vmem:[#allocation7 + $0xe0] sm:$0xff]
    %v487 = vld [vmem:[#allocation7 + $0xe8] sm:$0xff]
    %v488 = vld [vmem:[#allocation7 + $0xf0] sm:$0xff]
    %v489 = vld [vmem:[#allocation7 + $0xf8] sm:$0xff]
    %v490 = vld [vmem:[#allocation7 + $0x100] sm:$0xff]
    %v491 = vld [vmem:[#allocation7 + $0x108] sm:$0xff]
    %v508 = vunpack.c.l.b16 %v476
    %v509 = vunpack.c.h.b16 %v476
    %v510 = vunpack.c.l.b16 %v477
    %v511 = vunpack.c.h.b16 %v477
    %v512 = vunpack.c.l.b16 %v478
    %v513 = vunpack.c.h.b16 %v478
    %v514 = vunpack.c.l.b16 %v479
    %v515 = vunpack.c.h.b16 %v479
    %v516 = vunpack.c.l.b16 %v480
    %v517 = vunpack.c.h.b16 %v480
    %v518 = vunpack.c.l.b16 %v481
    %v519 = vunpack.c.h.b16 %v481
    %v520 = vunpack.c.l.b16 %v482
    %v521 = vunpack.c.h.b16 %v482
    %v522 = vunpack.c.l.b16 %v483
    %v523 = vunpack.c.h.b16 %v483
    %v524 = vunpack.c.l.b16 %v484
    %v525 = vunpack.c.h.b16 %v484
    %v526 = vunpack.c.l.b16 %v485
    %v527 = vunpack.c.h.b16 %v485
    %v528 = vunpack.c.l.b16 %v486
    %v529 = vunpack.c.h.b16 %v486
    %v530 = vunpack.c.l.b16 %v487
    %v531 = vunpack.c.h.b16 %v487
    %v532 = vunpack.c.l.b16 %v488
    %v533 = vunpack.c.h.b16 %v488
    %v534 = vunpack.c.l.b16 %v489
    %v535 = vunpack.c.h.b16 %v489
    %v536 = vunpack.c.l.b16 %v490
    %v537 = vunpack.c.h.b16 %v490
    %v538 = vunpack.c.l.b16 %v491
    %v539 = vunpack.c.h.b16 %v491
    %v540 = vpack.c.b16 %v510, %v508
    %v541 = vpack.c.b16 %v511, %v509
    %v542 = vpack.c.b16 %v514, %v512
    %v543 = vpack.c.b16 %v515, %v513
    %v544 = vpack.c.b16 %v518, %v516
    %v545 = vpack.c.b16 %v519, %v517
    %v546 = vpack.c.b16 %v522, %v520
    %v547 = vpack.c.b16 %v523, %v521
    %v548 = vpack.c.b16 %v526, %v524
    %v549 = vpack.c.b16 %v527, %v525
    %v550 = vpack.c.b16 %v530, %v528
    %v551 = vpack.c.b16 %v531, %v529
    %v552 = vpack.c.b16 %v534, %v532
    %v553 = vpack.c.b16 %v535, %v533
    %v554 = vpack.c.b16 %v538, %v536
    %v555 = vpack.c.b16 %v539, %v537
    %572 = vmatprep.subr.bf16.mxu0 %v555
    %573 = vmatpush1.bf16.msra.mxu0 %v554
    %574 = vmatprep.subr.bf16.mxu0 %v553
    %575 = vmatpush1.bf16.msra.mxu0 %v552
    %576 = vmatprep.subr.bf16.mxu0 %v551
    %577 = vmatpush1.bf16.msra.mxu0 %v550
    %578 = vmatprep.subr.bf16.mxu0 %v549
    %579 = vmatpush1.bf16.msra.mxu0 %v548
    %580 = vmatprep.subr.bf16.mxu0 %v547
    %581 = vmatpush1.bf16.msra.mxu0 %v546
    %582 = vmatprep.subr.bf16.mxu0 %v545
    %583 = vmatpush1.bf16.msra.mxu0 %v544
    %584 = vmatprep.subr.bf16.mxu0 %v543
    %585 = vmatpush1.bf16.msra.mxu0 %v542
    %586 = vmatprep.subr.bf16.mxu0 %v541
    %587 = vmatpush1.bf16.msra.mxu0 %v540
    %588 = vmatprep.subr.bf16.mxu0 0
    %589 = vmatpush2.bf16.msra.mxu0 0
    %590 = vmatprep.subr.bf16.mxu0 0
    %591 = vmatpush2.bf16.msra.mxu0 0
    %592 = vmatprep.subr.bf16.mxu0 0
    %593 = vmatpush2.bf16.msra.mxu0 0
    %594 = vmatprep.subr.bf16.mxu0 0
    %595 = vmatpush2.bf16.msra.mxu0 0
    %596 = vmatprep.subr.bf16.mxu0 0
    %597 = vmatpush2.bf16.msra.mxu0 0
    %598 = vmatprep.subr.bf16.mxu0 0
    %599 = vmatpush2.bf16.msra.mxu0 0
    %600 = vmatprep.subr.bf16.mxu0 0
    %601 = vmatpush2.bf16.msra.mxu0 0
    %602 = vmatprep.subr.bf16.mxu0 0
    %603 = vmatpush2.bf16.msra.mxu0 0
    %604 = vmatprep.mubr.bf16.mxu0 0
    %605 = vmatmul.mubr.bf16.gmra.mxu0 %v474
    %v606 = vpop.f32.mrf.mxu0
    %v607 = vadd.f32 0.0, %v606
    %v608 = vpop.f32.mrf.mxu0
    %v609 = vadd.f32 0.0, %v608
    %v610 = vpop.f32.mrf.mxu0
    %v611 = vadd.f32 0.0, %v610
    %v612 = vpop.f32.mrf.mxu0
    %v613 = vadd.f32 0.0, %v612
    %614 = vmatprep.mubr.bf16.mxu0 0
    %615 = vmatmul.mubr.bf16.gmra.mxu0 %v475
    %v616 = vpop.f32.mrf.mxu0
    %v617 = vadd.f32 0.0, %v616
    %v618 = vpop.f32.mrf.mxu0
    %v619 = vadd.f32 0.0, %v618
    %v620 = vpop.f32.mrf.mxu0
    %v621 = vadd.f32 0.0, %v620
    %v622 = vpop.f32.mrf.mxu0
    %v623 = vadd.f32 0.0, %v622
    %624 = vdwg.mxu0
    %v625 = vld [vmem:[#allocation8 + $0x3] sm:$0x1]
    %v626 = vlaneseq
    %v627 = vshrl.u32 %v626, 7
    %v628 = vsub.s32 0, %v627
    %v629 = vrot.slane %v625, %v628
    %v630 = vadd.f32 %v607, %v629
    %v631 = vadd.f32 %v611, %v629
    %v632 = vadd.f32 %v617, %v629
    %v633 = vadd.f32 %v621, %v629
    %v634 = vmax.f32 %v630, 0.0
    %v635 = vmax.f32 %v631, 0.0
    %v636 = vmax.f32 %v632, 0.0
    %v637 = vmax.f32 %v633, 0.0
    %v638 = vpack.c.bf16 %v635, %v634
    %v639 = vpack.c.bf16 %v637, %v636
    %v640 = vld [vmem:[#allocation7 + $0x110] sm:$0xf]
    %v641 = vld [vmem:[#allocation7 + $0x118] sm:$0xf]
    %v642 = vld [vmem:[#allocation7 + $0x120] sm:$0xf]
    %v643 = vld [vmem:[#allocation7 + $0x128] sm:$0xf]
    %v644 = vld [vmem:[#allocation7 + $0x130] sm:$0xf]
    %v645 = vld [vmem:[#allocation7 + $0x138] sm:$0xf]
    %v646 = vld [vmem:[#allocation7 + $0x140] sm:$0xf]
    %v647 = vld [vmem:[#allocation7 + $0x148] sm:$0xf]
    %v648 = vld [vmem:[#allocation7 + $0x150] sm:$0xf]
    %v649 = vld [vmem:[#allocation7 + $0x158] sm:$0xf]
    %v650 = vld [vmem:[#allocation7 + $0x160] sm:$0xf]
    %v651 = vld [vmem:[#allocation7 + $0x168] sm:$0xf]
    %v652 = vld [vmem:[#allocation7 + $0x170] sm:$0xf]
    %v653 = vld [vmem:[#allocation7 + $0x178] sm:$0xf]
    %v654 = vld [vmem:[#allocation7 + $0x180] sm:$0xf]
    %v655 = vld [vmem:[#allocation7 + $0x188] sm:$0xf]
    %v656 = vld [vmem:[#allocation8 + $0x4] sm:$0x1]
    %v657 = vlaneseq
    %v658 = vshrl.u32 %v657, 7
    %v659 = vsub.s32 0, %v658
    %v660 = vrot.slane %v656, %v659
    %v677 = vunpack.c.l.b16 %v640
    %v678 = vunpack.c.l.b16 %v641
    %v679 = vunpack.c.l.b16 %v642
    %v680 = vunpack.c.l.b16 %v643
    %v681 = vunpack.c.l.b16 %v644
    %v682 = vunpack.c.l.b16 %v645
    %v683 = vunpack.c.l.b16 %v646
    %v684 = vunpack.c.l.b16 %v647
    %v685 = vunpack.c.l.b16 %v648
    %v686 = vunpack.c.l.b16 %v649
    %v687 = vunpack.c.l.b16 %v650
    %v688 = vunpack.c.l.b16 %v651
    %v689 = vunpack.c.l.b16 %v652
    %v690 = vunpack.c.l.b16 %v653
    %v691 = vunpack.c.l.b16 %v654
    %v692 = vunpack.c.l.b16 %v655
    %v693 = vpack.c.b16 %v678, %v677
    %v694 = vpack.c.b16 %v680, %v679
    %v695 = vpack.c.b16 %v682, %v681
    %v696 = vpack.c.b16 %v684, %v683
    %v697 = vpack.c.b16 %v686, %v685
    %v698 = vpack.c.b16 %v688, %v687
    %v699 = vpack.c.b16 %v690, %v689
    %v700 = vpack.c.b16 %v692, %v691
    %709 = vmatprep.subr.bf16.mxu0 0
    %710 = vmatpush1.bf16.msra.mxu0 %v700
    %711 = vmatprep.subr.bf16.mxu0 0
    %712 = vmatpush1.bf16.msra.mxu0 %v699
    %713 = vmatprep.subr.bf16.mxu0 0
    %714 = vmatpush1.bf16.msra.mxu0 %v698
    %715 = vmatprep.subr.bf16.mxu0 0
    %716 = vmatpush1.bf16.msra.mxu0 %v697
    %717 = vmatprep.subr.bf16.mxu0 0
    %718 = vmatpush1.bf16.msra.mxu0 %v696
    %719 = vmatprep.subr.bf16.mxu0 0
    %720 = vmatpush1.bf16.msra.mxu0 %v695
    %721 = vmatprep.subr.bf16.mxu0 0
    %722 = vmatpush1.bf16.msra.mxu0 %v694
    %723 = vmatprep.subr.bf16.mxu0 0
    %724 = vmatpush1.bf16.msra.mxu0 %v693
    %725 = vmatprep.subr.bf16.mxu0 0
    %726 = vmatpush2.bf16.msra.mxu0 0
    %727 = vmatprep.subr.bf16.mxu0 0
    %728 = vmatpush2.bf16.msra.mxu0 0
    %729 = vmatprep.subr.bf16.mxu0 0
    %730 = vmatpush2.bf16.msra.mxu0 0
    %731 = vmatprep.subr.bf16.mxu0 0
    %732 = vmatpush2.bf16.msra.mxu0 0
    %733 = vmatprep.subr.bf16.mxu0 0
    %734 = vmatpush2.bf16.msra.mxu0 0
    %735 = vmatprep.subr.bf16.mxu0 0
    %736 = vmatpush2.bf16.msra.mxu0 0
    %737 = vmatprep.subr.bf16.mxu0 0
    %738 = vmatpush2.bf16.msra.mxu0 0
    %739 = vmatprep.subr.bf16.mxu0 0
    %740 = vmatpush2.bf16.msra.mxu0 0
    %741 = vmatprep.mubr.bf16.mxu0 0
    %742 = vmatmul.mubr.bf16.gmra.mxu0 %v638
    %v743 = vpop.f32.mrf.mxu0
    %v744 = vadd.f32 %v660, %v743
    %v745 = vpop.f32.mrf.mxu0
    %v746 = vpop.f32.mrf.mxu0
    %v747 = vadd.f32 %v660, %v746
    %v748 = vpop.f32.mrf.mxu0
    %749 = vmatprep.mubr.bf16.mxu0 0
    %750 = vmatmul.mubr.bf16.gmra.mxu0 %v639
    %v751 = vpop.f32.mrf.mxu0
    %v752 = vadd.f32 %v660, %v751
    %v753 = vpop.f32.mrf.mxu0
    %v754 = vpop.f32.mrf.mxu0
    %v755 = vadd.f32 %v660, %v754
    %v756 = vpop.f32.mrf.mxu0
    %757 = vdwg.mxu0
    %v758 = vmax.f32 %v744, 0.0
    %v759 = vmax.f32 %v747, 0.0
    %v760 = vmax.f32 %v752, 0.0
    %v761 = vmax.f32 %v755, 0.0
    %v762 = vld [vmem:[#allocation8 + $0x5] sm:$0x1]
    %v763 = vlaneseq
    %v764 = vshrl.u32 %v763, 7
    %v765 = vsub.s32 0, %v764
    %v766 = vrot.slane %v762, %v765
    %v767 = vadd.f32 %v609, %v766
    %v768 = vadd.f32 %v613, %v766
    %v769 = vadd.f32 %v619, %v766
    %v770 = vadd.f32 %v623, %v766
    %v771 = vadd.f32 %v758, %v767
    %v772 = vadd.f32 %v759, %v768
    %v773 = vadd.f32 %v760, %v769
    %v774 = vadd.f32 %v761, %v770
    %v775 = vmax.f32 %v771, 0.0
    %v776 = vmax.f32 %v772, 0.0
    %v777 = vmax.f32 %v773, 0.0
    %v778 = vmax.f32 %v774, 0.0
    %v779 = vpack.c.bf16 %v776, %v775
    %v780 = vpack.c.bf16 %v778, %v777
    %v781 = vld [vmem:[#allocation7 + $0x190] sm:$0xf]
    %v782 = vld [vmem:[#allocation7 + $0x198] sm:$0xf]
    %v783 = vld [vmem:[#allocation7 + $0x1a0] sm:$0xf]
    %v784 = vld [vmem:[#allocation7 + $0x1a8] sm:$0xf]
    %v785 = vld [vmem:[#allocation7 + $0x1b0] sm:$0xf]
    %v786 = vld [vmem:[#allocation7 + $0x1b8] sm:$0xf]
    %v787 = vld [vmem:[#allocation7 + $0x1c0] sm:$0xf]
    %v788 = vld [vmem:[#allocation7 + $0x1c8] sm:$0xf]
    %v789 = vld [vmem:[#allocation7 + $0x1d0] sm:$0xf]
    %v790 = vld [vmem:[#allocation7 + $0x1d8] sm:$0xf]
    %v791 = vld [vmem:[#allocation7 + $0x1e0] sm:$0xf]
    %v792 = vld [vmem:[#allocation7 + $0x1e8] sm:$0xf]
    %v793 = vld [vmem:[#allocation7 + $0x1f0] sm:$0xf]
    %v794 = vld [vmem:[#allocation7 + $0x1f8] sm:$0xf]
    %v795 = vld [vmem:[#allocation7 + $0x200] sm:$0xf]
    %v796 = vld [vmem:[#allocation7 + $0x208] sm:$0xf]
    %v797 = vld [vmem:[#allocation8 + $0x6] sm:$0x1]
    %v798 = vlaneseq
    %v799 = vshrl.u32 %v798, 7
    %v800 = vsub.s32 0, %v799
    %v801 = vrot.slane %v797, %v800
    %v818 = vunpack.c.l.b16 %v781
    %v819 = vunpack.c.l.b16 %v782
    %v820 = vunpack.c.l.b16 %v783
    %v821 = vunpack.c.l.b16 %v784
    %v822 = vunpack.c.l.b16 %v785
    %v823 = vunpack.c.l.b16 %v786
    %v824 = vunpack.c.l.b16 %v787
    %v825 = vunpack.c.l.b16 %v788
    %v826 = vunpack.c.l.b16 %v789
    %v827 = vunpack.c.l.b16 %v790
    %v828 = vunpack.c.l.b16 %v791
    %v829 = vunpack.c.l.b16 %v792
    %v830 = vunpack.c.l.b16 %v793
    %v831 = vunpack.c.l.b16 %v794
    %v832 = vunpack.c.l.b16 %v795
    %v833 = vunpack.c.l.b16 %v796
    %v834 = vpack.c.b16 %v819, %v818
    %v835 = vpack.c.b16 %v821, %v820
    %v836 = vpack.c.b16 %v823, %v822
    %v837 = vpack.c.b16 %v825, %v824
    %v838 = vpack.c.b16 %v827, %v826
    %v839 = vpack.c.b16 %v829, %v828
    %v840 = vpack.c.b16 %v831, %v830
    %v841 = vpack.c.b16 %v833, %v832
    %850 = vmatprep.subr.bf16.mxu0 0
    %851 = vmatpush1.bf16.msra.mxu0 %v841
    %852 = vmatprep.subr.bf16.mxu0 0
    %853 = vmatpush1.bf16.msra.mxu0 %v840
    %854 = vmatprep.subr.bf16.mxu0 0
    %855 = vmatpush1.bf16.msra.mxu0 %v839
    %856 = vmatprep.subr.bf16.mxu0 0
    %857 = vmatpush1.bf16.msra.mxu0 %v838
    %858 = vmatprep.subr.bf16.mxu0 0
    %859 = vmatpush1.bf16.msra.mxu0 %v837
    %860 = vmatprep.subr.bf16.mxu0 0
    %861 = vmatpush1.bf16.msra.mxu0 %v836
    %862 = vmatprep.subr.bf16.mxu0 0
    %863 = vmatpush1.bf16.msra.mxu0 %v835
    %864 = vmatprep.subr.bf16.mxu0 0
    %865 = vmatpush1.bf16.msra.mxu0 %v834
    %866 = vmatprep.subr.bf16.mxu0 0
    %867 = vmatpush2.bf16.msra.mxu0 0
    %868 = vmatprep.subr.bf16.mxu0 0
    %869 = vmatpush2.bf16.msra.mxu0 0
    %870 = vmatprep.subr.bf16.mxu0 0
    %871 = vmatpush2.bf16.msra.mxu0 0
    %872 = vmatprep.subr.bf16.mxu0 0
    %873 = vmatpush2.bf16.msra.mxu0 0
    %874 = vmatprep.subr.bf16.mxu0 0
    %875 = vmatpush2.bf16.msra.mxu0 0
    %876 = vmatprep.subr.bf16.mxu0 0
    %877 = vmatpush2.bf16.msra.mxu0 0
    %878 = vmatprep.subr.bf16.mxu0 0
    %879 = vmatpush2.bf16.msra.mxu0 0
    %880 = vmatprep.subr.bf16.mxu0 0
    %881 = vmatpush2.bf16.msra.mxu0 0
    %882 = vmatprep.mubr.bf16.mxu0 0
    %883 = vmatmul.mubr.bf16.gmra.mxu0 %v779
    %v884 = vpop.f32.mrf.mxu0
    %v885 = vadd.f32 %v801, %v884
    %v886 = vpop.f32.mrf.mxu0
    %v887 = vpop.f32.mrf.mxu0
    %v888 = vadd.f32 %v801, %v887
    %v889 = vpop.f32.mrf.mxu0
    %890 = vmatprep.mubr.bf16.mxu0 0
    %891 = vmatmul.mubr.bf16.gmra.mxu0 %v780
    %v892 = vpop.f32.mrf.mxu0
    %v893 = vadd.f32 %v801, %v892
    %v894 = vpop.f32.mrf.mxu0
    %v895 = vpop.f32.mrf.mxu0
    %v896 = vadd.f32 %v801, %v895
    %v897 = vpop.f32.mrf.mxu0
    %898 = vdwg.mxu0
    %899 = vst.msk [vmem:[#allocation10] sm:$0xff] %vm94, %v885
    %900 = vst.msk [vmem:[#allocation10 + $0x8] sm:$0xff] %vm94, %v888
    %901 = vst.msk [vmem:[#allocation10 + $0x10] sm:$0xff] %vm94, %v893
    %902 = vst.msk [vmem:[#allocation10 + $0x18] sm:$0xff] %vm94, %v896
    // Predicated region
    $region34: #{tpu_custom_call.1} parent=1 // pred_check
      _
    $region35: #{tpu_custom_call.1} parent=1 // pred_check_branch
      %904 = sbr.rel (0) target = $region37
    $region36: #{tpu_custom_call.1} parent=1 // pred_region
      %s906 = ssub.s32 512, 512
      %907 = vsyncadd [#allocation4], %s906
      %s908 = sshll.u32 [#allocation10], 4
      %s909 = int_to_ptr.vmem [resolvable:$true] %s908
      %914 = dma.vmem_to_hbm [thread:$0]  %s909, 512, %s4, [#allocation4], 128, 128, 8
    $region37: #{tpu_custom_call.1} parent=1 // pred_fallthru
      _
    // Predicated region
    $region38: #{tpu_custom_call.1} parent=1 // pred_check
      _
    $region39: #{tpu_custom_call.1} parent=1 // pred_check_branch
      %916 = sbr.rel (0) target = $region41
    $region40: #{tpu_custom_call.1} parent=1 // pred_region
      %917 = dma.done [#allocation4], 512
    $region41: #{tpu_custom_call.1} parent=1 // pred_fallthru
      _
    %918 = vsyncpa [#allocation3], 1
    %919 = vsyncpa [#allocation6], 1
    %920 = vsyncpa [#allocation9], 1
    %921 = vsyncpa [#allocation4], 1

</llo_original>
